<compile_context>
chip_gen: v5e
topology: v5e:2x2
jax: 0.10.0
libtpu: 0.0.40
codegen_flags: <defaults>
</compile_context>

<pallas_src>
import numpy as np
import jax
import jax.numpy as jnp
from jax import lax
from jax.experimental import pallas as pl
from jax.experimental.pallas import tpu as pltpu

EPS = 1e-8          # matches the TFN reference EPS (eps_l2_norm / order-2 clamp)
LANES = 1024        # lane-dense tile width (multiple of 128)
TARGET_STEPS = 8    # aim for >= this many grid steps (pipelining / megacore)


def _round_up(x, m):
    return (x + m - 1) // m * m


def _cdiv(a, b):
    return -(-a // b)


def _sublane_multiple(dtype):
    # f32 -> 8 rows/vreg, bf16/f16 -> 16, int8/fp8 -> 32
    itemsize = jnp.dtype(dtype).itemsize
    return max(8, 32 // max(1, itemsize))


def _row_tile_and_vmem_limit():
    """Generation-aware tile: shrink on v7x (64 MiB physical VMEM)."""
    try:
        info = pltpu.get_tpu_info()
        vmem_cap = int(getattr(info, "vmem_capacity_bytes", 0) or 0)
    except Exception:
        vmem_cap = 0
    if 0 < vmem_cap <= 96 * 1024 * 1024:
        return 256, 32 * 1024 * 1024      # v7x: 1 MiB slabs, ~16 MiB live order-2
    return 512, 48 * 1024 * 1024          # v5e/v6e: 2 MiB slabs, ~32 MiB live


# ---------------- kernels ----------------

def _order1_kernel(r_ref, o_ref):
    # order 1: rij / eps_l2_norm(rij), eps_l2_norm = sqrt(max(|rij|^2, EPS))
    x = r_ref[0].astype(jnp.float32)
    y = r_ref[1].astype(jnp.float32)
    z = r_ref[2].astype(jnp.float32)
    r2 = x * x + y * y + z * z
    inv_norm = lax.rsqrt(jnp.maximum(r2, EPS))      # EUP rsqrt (free slot)
    dt = o_ref.dtype
    o_ref[0] = (x * inv_norm).astype(dt)
    o_ref[1] = (y * inv_norm).astype(dt)
    o_ref[2] = (z * inv_norm).astype(dt)


def _order2_kernel(r_ref, o_ref):
    # order 2: the five real l=2 harmonics (TFN convention)
    x = r_ref[0].astype(jnp.float32)
    y = r_ref[1].astype(jnp.float32)
    z = r_ref[2].astype(jnp.float32)
    r2 = x * x + y * y + z * z
    inv_r2 = 1.0 / jnp.maximum(r2, EPS)             # EXACT reciprocal (kernel is HBM-bound)
    dt = o_ref.dtype
    c2 = np.float32(1.0 / (2.0 * np.sqrt(3.0)))
    o_ref[0] = (x * y * inv_r2).astype(dt)
    o_ref[1] = (y * z * inv_r2).astype(dt)
    o_ref[2] = ((2.0 * z * z - x * x - y * y) * inv_r2 * c2).astype(dt)
    o_ref[3] = (z * x * inv_r2).astype(dt)
    o_ref[4] = ((x * x - y * y) * inv_r2 * 0.5).astype(dt)


# ---------------- wrapper ----------------

def harmonic_forward(rij, order, planar_output=False):
    """Pallas implementation of Harmonic(order).forward(rij); rij: (B, N, M, 3).

    planar_output=False (default) returns (B, N, M, n_out) like the module;
    planar_output=True returns (n_out, B, N, M) and skips the final transpose.
    """
    if order < 0:
        raise ValueError("Spherical harmonic must be of positive order!")
    if order > 2:
        raise NotImplementedError("Spherical harmonics only supported up to order 2.")

    B, N, M, D = rij.shape
    assert D == 3

    if order == 0:
        # Pure constant: no kernel launch. Note: float32 regardless of rij.dtype,
        # matching torch.ones default in the reference module.
        ones = jnp.ones((B, N, M, 1), jnp.float32)
        return jnp.transpose(ones, (3, 0, 1, 2)) if planar_output else ones

    total = B * N * M
    sub = _sublane_multiple(rij.dtype)
    row_tile, vmem_limit = _row_tile_and_vmem_limit()

    # Lane-dense layout: flatten all points and view as (rows, L) with 128 | L.
    L = min(LANES, _round_up(total, 128))
    rows = _cdiv(total, L)
    rows_padded = _round_up(rows, sub)              # pad only to the sublane multiple

    # Aim for >= TARGET_STEPS grid steps so input-DMA / compute / output-DMA overlap
    # and both v7x TensorCores get work; cap at the generation row tile.
    block_rows = min(row_tile, max(sub, _round_up(_cdiv(rows_padded, TARGET_STEPS), sub)))
    grid = (pl.cdiv(rows_padded, block_rows),)      # partial last block is legal

    # Single transpose to planar components, pad the flat tail with zeros
    # (zero rows produce finite outputs; any garbage beyond rows_padded in a
    # partial last block is masked on store).
    comps = jnp.transpose(rij, (3, 0, 1, 2)).reshape(3, total)
    pad = rows_padded * L - total
    if pad:
        comps = jnp.pad(comps, ((0, 0), (0, pad)))
    comps = comps.reshape(3, rows_padded, L)

    n_out = 3 if order == 1 else 5
    kernel = _order1_kernel if order == 1 else _order2_kernel

    itemsize = jnp.dtype(rij.dtype).itemsize
    padded_pts = rows_padded * L
    cost = pl.CostEstimate(
        flops=(9 if order == 1 else 18) * padded_pts,
        transcendentals=(padded_pts if order == 1 else 0),
        bytes_accessed=(3 + n_out) * padded_pts * itemsize,
    )

    out = pl.pallas_call(
        kernel,
        out_shape=jax.ShapeDtypeStruct((n_out, rows_padded, L), rij.dtype),
        grid=grid,
        in_specs=[pl.BlockSpec((3, block_rows, L), lambda i: (0, i, 0))],
        out_specs=pl.BlockSpec((n_out, block_rows, L), lambda i: (0, i, 0)),
        compiler_params=pltpu.CompilerParams(
            dimension_semantics=("parallel",),
            vmem_limit_bytes=vmem_limit,
        ),
        cost_estimate=cost,
    )(comps)

    # Strip padding; optionally restore channel-last layout with one transpose.
    out = out.reshape(n_out, rows_padded * L)[:, :total].reshape(n_out, B, N, M)
    if planar_output:
        return out
    return jnp.transpose(out, (1, 2, 3, 0))


# ---------------- pure-JAX reference (for correctness check) ----------------

def harmonic_ref(rij, order):
    if order == 0:
        return jnp.ones(rij.shape[:3] + (1,), jnp.float32)
    if order == 1:
        r2 = jnp.sum(rij ** 2, axis=-1, keepdims=True)
        return rij / jnp.sqrt(jnp.maximum(r2, EPS))
    x, y, z = rij[..., 0], rij[..., 1], rij[..., 2]
    r2 = jnp.maximum(jnp.sum(rij ** 2, axis=-1), EPS)
    return jnp.stack(
        [x * y / r2,
         y * z / r2,
         (2 * z ** 2 - x ** 2 - y ** 2) / (2 * np.sqrt(3) * r2),
         z * x / r2,
         (x ** 2 - y ** 2) / (2 * r2)],
        axis=-1,
    )


if __name__ == "__main__":
    key = jax.random.PRNGKey(0)
    # (batch, n_points, n_neighbors, 3). The second shape exercises the
    # multi-step grid and the partial last block.
    shapes = [(2, 8, 8, 3), (8, 96, 96, 3)]
    n_out_for = {0: 1, 1: 3, 2: 5}

    for shp in shapes:
        key, sub = jax.random.split(key)
        rij = jax.random.normal(sub, shp, dtype=jnp.float32)
        for order in (0, 1, 2):
            out = jax.block_until_ready(harmonic_forward(rij, order))
            ref = harmonic_ref(rij, order)
            assert out.shape == shp[:3] + (n_out_for[order],), out.shape
            np.testing.assert_allclose(np.asarray(out), np.asarray(ref),
                                       rtol=1e-5, atol=1e-6)

    # Planar (channel-first) output path: skips the final transpose entirely.
    rij = jax.random.normal(jax.random.PRNGKey(1), (2, 8, 8, 3), dtype=jnp.float32)
    planar = jax.block_until_ready(harmonic_forward(rij, 2, planar_output=True))
    assert planar.shape == (5, 2, 8, 8), planar.shape
    np.testing.assert_allclose(np.transpose(np.asarray(planar), (1, 2, 3, 0)),
                               np.asarray(harmonic_ref(rij, 2)),
                               rtol=1e-5, atol=1e-6)

    print("KERNEL_OK")
</pallas_src>

<mosaic_0001>
module attributes {stable_mosaic.version = 11 : i64} {
  func.func @_order1_kernel(%arg0: i32, %arg1: memref<3x8x128xf32, #tpu.memory_space<vmem>>, %arg2: memref<3x8x128xf32, #tpu.memory_space<vmem>>) attributes {dimension_semantics = [#tpu.dimension_semantics<parallel>], iteration_bounds = array<i64: 1>, scalar_prefetch = 0 : i64, scratch_operands = 0 : i64, tpu.core_type = #tpu.core_type<tc>, window_params = [{transform_indices = @transform_0, window_bounds = array<i64: 3, 8, 128>}, {transform_indices = @transform_1, window_bounds = array<i64: 3, 8, 128>}]} {
    %c0 = arith.constant 0 : index
    %c0_0 = arith.constant 0 : index
    %c0_1 = arith.constant 0 : index
    %0 = vector.load %arg1[%c0, %c0_0, %c0_1] : memref<3x8x128xf32, #tpu.memory_space<vmem>>, vector<1x8x128xf32>
    %1 = vector.shape_cast %0 : vector<1x8x128xf32> to vector<8x128xf32>
    %c1 = arith.constant 1 : index
    %c0_2 = arith.constant 0 : index
    %c0_3 = arith.constant 0 : index
    %2 = vector.load %arg1[%c1, %c0_2, %c0_3] : memref<3x8x128xf32, #tpu.memory_space<vmem>>, vector<1x8x128xf32>
    %3 = vector.shape_cast %2 : vector<1x8x128xf32> to vector<8x128xf32>
    %c2 = arith.constant 2 : index
    %c0_4 = arith.constant 0 : index
    %c0_5 = arith.constant 0 : index
    %4 = vector.load %arg1[%c2, %c0_4, %c0_5] : memref<3x8x128xf32, #tpu.memory_space<vmem>>, vector<1x8x128xf32>
    %5 = vector.shape_cast %4 : vector<1x8x128xf32> to vector<8x128xf32>
    %6 = arith.mulf %1, %1 : vector<8x128xf32>
    %7 = arith.mulf %3, %3 : vector<8x128xf32>
    %8 = arith.addf %6, %7 : vector<8x128xf32>
    %9 = arith.mulf %5, %5 : vector<8x128xf32>
    %10 = arith.addf %8, %9 : vector<8x128xf32>
    %cst = arith.constant 9.99999993E-9 : f32
    %11 = vector.broadcast %cst : f32 to vector<8x128xf32>
    %12 = arith.maximumf %10, %11 : vector<8x128xf32>
    %13 = math.rsqrt %12 : vector<8x128xf32>
    %14 = arith.mulf %1, %13 : vector<8x128xf32>
    %c0_6 = arith.constant 0 : index
    %c0_7 = arith.constant 0 : index
    %c0_8 = arith.constant 0 : index
    %15 = vector.load %arg2[%c0_6, %c0_7, %c0_8] : memref<3x8x128xf32, #tpu.memory_space<vmem>>, vector<1x8x128xf32>
    %16 = vector.shape_cast %15 : vector<1x8x128xf32> to vector<8x128xf32>
    %17 = vector.shape_cast %14 : vector<8x128xf32> to vector<1x8x128xf32>
    tpu.vector_store %arg2[%c0_6, %c0_7, %c0_8], %17 {strides = array<i32>} : memref<3x8x128xf32, #tpu.memory_space<vmem>>, vector<1x8x128xf32>,
    %18 = arith.mulf %3, %13 : vector<8x128xf32>
    %c1_9 = arith.constant 1 : index
    %c0_10 = arith.constant 0 : index
    %c0_11 = arith.constant 0 : index
    %19 = vector.load %arg2[%c1_9, %c0_10, %c0_11] : memref<3x8x128xf32, #tpu.memory_space<vmem>>, vector<1x8x128xf32>
    %20 = vector.shape_cast %19 : vector<1x8x128xf32> to vector<8x128xf32>
    %21 = vector.shape_cast %18 : vector<8x128xf32> to vector<1x8x128xf32>
    tpu.vector_store %arg2[%c1_9, %c0_10, %c0_11], %21 {strides = array<i32>} : memref<3x8x128xf32, #tpu.memory_space<vmem>>, vector<1x8x128xf32>,
    %22 = arith.mulf %5, %13 : vector<8x128xf32>
    %c2_12 = arith.constant 2 : index
    %c0_13 = arith.constant 0 : index
    %c0_14 = arith.constant 0 : index
    %23 = vector.load %arg2[%c2_12, %c0_13, %c0_14] : memref<3x8x128xf32, #tpu.memory_space<vmem>>, vector<1x8x128xf32>
    %24 = vector.shape_cast %23 : vector<1x8x128xf32> to vector<8x128xf32>
    %25 = vector.shape_cast %22 : vector<8x128xf32> to vector<1x8x128xf32>
    tpu.vector_store %arg2[%c2_12, %c0_13, %c0_14], %25 {strides = array<i32>} : memref<3x8x128xf32, #tpu.memory_space<vmem>>, vector<1x8x128xf32>,
    return
  }
  func.func @transform_0(%arg0: i32) -> (i32, i32, i32) {
    %c0_i32 = arith.constant 0 : i32
    %c0_i32_0 = arith.constant 0 : i32
    %c0_i32_1 = arith.constant 0 : i32
    return %c0_i32, %arg0, %c0_i32_0 : i32, i32, i32
  }
  func.func @transform_1(%arg0: i32) -> (i32, i32, i32) {
    %c0_i32 = arith.constant 0 : i32
    %c0_i32_0 = arith.constant 0 : i32
    %c0_i32_1 = arith.constant 0 : i32
    return %c0_i32, %arg0, %c0_i32_0 : i32, i32, i32
  }
}

</mosaic_0001>

<llo_original>
// kernel: tpu_custom_call.1
$region0: #{tpu_custom_call.1}
  #allocation0 [shape = 'u32[]', space=smem, size = 0x4, offset = 0x4, fixed_abs, tag = 'smem constant byte address 0x4 - core index']
  #allocation1 [shape = 'u32[72,128]{1,0:T(1,128)}', space=vmem, size = 0x9000, scoped, tag = 'internal scratch']
  %s0 = inlined_call_operand.hbm [shape: f32[3,8,128], index: 0, kind: input, shape index: {}]
  %s1 = inlined_call_operand.hbm [shape: f32[3,8,128], index: 1, kind: output, shape index: {}]
  %s2 = sld [smem:[#allocation0]]
  $region18: #{tpu_custom_call.1} parent=0
    _
  %s4 = ssub.s32 1, %s2
  %s5 = scalar_select 0, %s4, %s2
  $region1: #{tpu_custom_call.1} parent=0
    #allocation2 [shape = 'u8[12288]{0}', space=vmem, size = 0x3000, scoped, tag = 'input window, operand 0, single buffered']
    #allocation3 [shape = 's32[1]{0}', space=sflag, size = 0x4, scoped, tag = 'scoped memory for tpu_custom_call.1']
    #allocation4 [shape = 's32[1]{0}', space=sflag, size = 0x4, scoped, tag = 'scoped memory for tpu_custom_call.1']
    #allocation5 [shape = 'u8[12288]{0}', space=vmem, size = 0x3000, scoped, tag = 'output window, operand 0, single buffered']
    %6 = vsyncpa [#allocation3], 0
    %7 = vsyncpa [#allocation4], 0
    // Predicated region
    $region2: #{tpu_custom_call.1} parent=1 // pred_check
      _
    $region3: #{tpu_custom_call.1} parent=1 // pred_check_branch
      %9 = sbr.rel (0) target = $region5
    $region4: #{tpu_custom_call.1} parent=1 // pred_region
      %11 = vsyncadd [#allocation3], 0
      %s12 = sshll.u32 %s0, 4
      %s13 = int_to_ptr.hbm [resolvable:$true] %s12
      %s14 = sshll.u32 [#allocation2], 4
      %s15 = int_to_ptr.vmem [resolvable:$true] %s14
      %20 = dma.hbm_to_vmem [thread:$0]  %s13, 384, %s15, [#allocation3], 128, 128, 8
    $region5: #{tpu_custom_call.1} parent=1 // pred_fallthru
      _
    // Predicated region
    $region6: #{tpu_custom_call.1} parent=1 // pred_check
      _
    $region7: #{tpu_custom_call.1} parent=1 // pred_check_branch
      %22 = sbr.rel (0) target = $region9
    $region8: #{tpu_custom_call.1} parent=1 // pred_region
      %24 = dma.done [#allocation3], 384
    $region9: #{tpu_custom_call.1} parent=1 // pred_fallthru
      _
    %v25 = vld [vmem:[#allocation2] sm:$0xff]
    %s26 = scalar_lea.vmem [#allocation2], 8
    %v27 = vld [vmem:[%s26] sm:$0xff]
    %s28 = scalar_lea.vmem [#allocation2], 16
    %v29 = vld [vmem:[%s28] sm:$0xff]
    %v30 = vmul.f32 %v25, %v25
    %v31 = vmul.f32 %v27, %v27
    %v32 = vadd.f32 %v30, %v31
    %v33 = vmul.f32 %v29, %v29
    %v34 = vadd.f32 %v32, %v33
    %v35 = vmax.f32 %v34, 1e-08
    %v36 = vrsqrt.pop %v35
    %v37 = vmul.f32 %v36, %v35
    %v38 = vmul.f32 %v37, %v36
    %v39 = vmul.f32 0.5, %v38
    %v40 = vsub.f32 1.5, %v39
    %v41 = vmul.f32 %v36, %v40
    %vm42 = vweird.f32 %v35
    %vm43 = vweird.f32 %v36
    %vm44 = vmor %vm42, %vm43
    %v45 = vsel %vm44, %v36, %v41
    %v46 = vmul.f32 %v25, %v45
    %47 = vst [vmem:[#allocation5] sm:$0xff] %v46
    %v48 = vmul.f32 %v27, %v45
    %s49 = scalar_lea.vmem [#allocation5], 8
    %50 = vst [vmem:[%s49] sm:$0xff] %v48
    %v51 = vmul.f32 %v29, %v45
    %s52 = scalar_lea.vmem [#allocation5], 16
    %53 = vst [vmem:[%s52] sm:$0xff] %v51
    // Predicated region
    $region10: #{tpu_custom_call.1} parent=1 // pred_check
      _
    $region11: #{tpu_custom_call.1} parent=1 // pred_check_branch
      %55 = sbr.rel (0) target = $region13
    $region12: #{tpu_custom_call.1} parent=1 // pred_region
      %57 = vsyncadd [#allocation4], 0
      %s58 = sshll.u32 [#allocation5], 4
      %s59 = int_to_ptr.vmem [resolvable:$true] %s58
      %s60 = sshll.u32 %s1, 4
      %s61 = int_to_ptr.hbm [resolvable:$true] %s60
      %66 = dma.vmem_to_hbm [thread:$0]  %s59, 384, %s61, [#allocation4], 128, 128, 8
    $region13: #{tpu_custom_call.1} parent=1 // pred_fallthru
      _
    // Predicated region
    $region14: #{tpu_custom_call.1} parent=1 // pred_check
      _
    $region15: #{tpu_custom_call.1} parent=1 // pred_check_branch
      %68 = sbr.rel (0) target = $region17
    $region16: #{tpu_custom_call.1} parent=1 // pred_region
      %70 = dma.done [#allocation4], 384
    $region17: #{tpu_custom_call.1} parent=1 // pred_fallthru
      _
    %71 = vsyncpa [#allocation3], 1
    %72 = vsyncpa [#allocation4], 1

</llo_original>
